<compile_context>
chip_gen: v7x
topology: tpu7x:2x2x1
jax: 0.10.0
libtpu: 0.0.40
codegen_flags: <defaults>
</compile_context>

<pallas_src>
import jax
import jax.numpy as jnp
import numpy as np
from jax import lax
from jax.experimental import pallas as pl
from jax.experimental.pallas import tpu as pltpu


def _round_up(x, m):
    return ((x + m - 1) // m) * m


def _choose_tile(n_items):
    # <=128 items: one block (block dim == full extent, so any multiple of 8
    # is a legal last dim). >128: 128-wide lane-dense tiles -> several grid
    # steps, shardable across v7x's two TensorCores.
    if n_items <= 128:
        return _round_up(max(n_items, 1), 8)
    return 128


def _od2score_kernel(det_ref, tp_ref, out_ref):
    # det_ref: (6, Npad, S) detections; S = TILE pairs, or 1 (shared image).
    #          rows x1,y1,x2,y2,conf,cls; detections on sublanes, pairs/targets on lanes.
    # tp_ref : (8, TILE) per-target params [tx1,ty1,tx2,ty2,cls,thresh,count,unused].
    # out_ref: (1, TILE) lane-dense scores.
    x1, y1 = det_ref[0], det_ref[1]
    x2, y2 = det_ref[2], det_ref[3]
    conf, cls = det_ref[4], det_ref[5]

    tp = tp_ref[...]
    tx1, ty1, tx2, ty2 = tp[0:1], tp[1:2], tp[2:3], tp[3:4]
    tcls, thr, cnt = tp[4:5], tp[5:6], tp[6:7]

    # IoU of every detection (sublanes) against every target column (lanes).
    iw = jnp.maximum(jnp.minimum(x2, tx2) - jnp.maximum(x1, tx1), 0.0)
    ih = jnp.maximum(jnp.minimum(y2, ty2) - jnp.maximum(y1, ty1), 0.0)
    inter = iw * ih
    union = (x2 - x1) * (y2 - y1) + (tx2 - tx1) * (ty2 - ty1) - inter
    # Exact divide: keeps the argmax (and therefore the selected conf) faithful.
    iou = inter / (union + 1e-16)

    n_pad = det_ref.shape[1]
    idx = lax.broadcasted_iota(jnp.int32, iou.shape, 0).astype(jnp.float32)
    valid = (conf >= thr) & (cls == tcls) & (idx < cnt)
    masked_iou = jnp.where(valid, iou, -1.0)

    # Three cross-sublane reductions; collapsing to two (packed key) is a
    # minor win that stays hidden behind the VPU work at these sizes.
    best_iou = jnp.max(masked_iou, axis=0, keepdims=True)                  # (1, T)
    best_idx = jnp.min(jnp.where(masked_iou == best_iou, idx, float(n_pad)),
                       axis=0, keepdims=True)                              # (1, T) first occurrence
    best_conf = jnp.max(jnp.where(idx == best_idx, conf, -jnp.inf),
                        axis=0, keepdims=True)                             # (1, T)

    # best_iou >= 0  <=>  at least one valid detection (IoU is never negative).
    out_ref[...] = jnp.where(best_iou >= 0.0, best_conf * best_iou, 0.0)


def _launch(slab, params, tile, padded, shared_slab):
    n_pad = slab.shape[1]
    if shared_slab:
        # One image's detections reused by every target chunk: constant block
        # index -> the slab is DMA'd into VMEM once, not per grid step.
        slab_spec = pl.BlockSpec((6, n_pad, 1), lambda t: (0, 0, 0))
    else:
        slab_spec = pl.BlockSpec((6, n_pad, tile), lambda t: (0, 0, t))
    return pl.pallas_call(
        _od2score_kernel,
        out_shape=jax.ShapeDtypeStruct((1, padded), jnp.float32),
        grid=(padded // tile,),
        in_specs=[slab_spec,
                  pl.BlockSpec((8, tile), lambda t: (0, t))],
        out_specs=pl.BlockSpec((1, tile), lambda t: (0, t)),
        compiler_params=pltpu.CompilerParams(
            dimension_semantics=("parallel",)),
    )(slab, params)


def _pack_params(boxes, classes, thresh, counts, n_items, padded):
    boxes = jnp.asarray(boxes, jnp.float32).reshape(n_items, 4)
    classes = jnp.broadcast_to(
        jnp.asarray(classes, jnp.float32).reshape(-1), (n_items,))
    thresh = jnp.broadcast_to(
        jnp.asarray(thresh, jnp.float32).reshape(-1), (n_items,))
    counts = jnp.broadcast_to(
        jnp.asarray(counts, jnp.float32).reshape(-1), (n_items,))
    params = jnp.concatenate(
        [boxes, classes[:, None], thresh[:, None], counts[:, None],
         jnp.zeros((n_items, 1), jnp.float32)], axis=1)            # (n_items, 8)
    return jnp.pad(params, ((0, padded - n_items), (0, 0))).T       # (8, padded)


def od2score_batch(xyxy, conf, cls, target_boxes, target_classes,
                   conf_thresh=0.25, counts=None):
    """B independent (image, target) evaluations (the SHAP perturbation pattern).

    xyxy: (B, N, 4); conf/cls: (B, N); target_boxes: (B, 4);
    target_classes / conf_thresh: scalar or (B,); counts: optional (B,) true
    detection counts (defaults to N). Returns (B,) float32 scores.
    """
    xyxy = jnp.asarray(xyxy, jnp.float32)
    conf = jnp.asarray(conf, jnp.float32)
    cls = jnp.asarray(cls, jnp.float32)
    B, N, _ = xyxy.shape
    n_pad = _round_up(max(N, 1), 8)
    tile = _choose_tile(B)
    b_pad = _round_up(B, tile)

    # TODO(synk): have upstream emit this field-major / pair-minor layout
    # directly; this transpose+pad pass costs roughly one extra HBM sweep.
    fields = jnp.concatenate([xyxy, conf[..., None], cls[..., None]], axis=-1)
    slab = jnp.transpose(fields, (2, 1, 0))                         # (6, N, B)
    slab = jnp.pad(slab, ((0, 0), (0, n_pad - N), (0, b_pad - B)))  # (6, Npad, Bpad)

    cnt = (jnp.full((B,), float(N), jnp.float32) if counts is None
           else jnp.asarray(counts, jnp.float32).reshape(B))
    params = _pack_params(target_boxes, target_classes, conf_thresh, cnt, B, b_pad)

    out = _launch(slab, params, tile, b_pad, shared_slab=False)
    return out[0, :B]


def od2score_multi_target(xyxy, conf, cls, target_boxes, target_classes,
                          conf_thresh=0.25, count=None):
    """One image's detections scored against T targets.

    xyxy: (N, 4); conf/cls: (N,); target_boxes: (T, 4);
    target_classes / conf_thresh: scalar or (T,). Returns (T,) scores.
    The detection slab is DMA'd once; only per-target params stream per step.
    """
    xyxy = jnp.asarray(xyxy, jnp.float32)
    conf = jnp.asarray(conf, jnp.float32)
    cls = jnp.asarray(cls, jnp.float32)
    N = xyxy.shape[0]
    target_boxes = jnp.asarray(target_boxes, jnp.float32).reshape(-1, 4)
    T = target_boxes.shape[0]
    n_pad = _round_up(max(N, 1), 8)
    tile = _choose_tile(T)
    t_pad = _round_up(T, tile)

    fields = jnp.concatenate([xyxy, conf[:, None], cls[:, None]], axis=-1)   # (N, 6)
    slab = jnp.pad(fields.T[:, :, None], ((0, 0), (0, n_pad - N), (0, 0)))   # (6, Npad, 1)

    cnt = float(N) if count is None else count
    params = _pack_params(target_boxes, target_classes, conf_thresh, cnt, T, t_pad)

    out = _launch(slab, params, tile, t_pad, shared_slab=True)
    return out[0, :T]


def od2score(xyxy, conf, cls, target_box, target_class, conf_thresh=0.25):
    """Single (image, target) evaluation; returns shape (1,) like the module."""
    return od2score_batch(
        jnp.asarray(xyxy, jnp.float32)[None],
        jnp.asarray(conf, jnp.float32)[None],
        jnp.asarray(cls, jnp.float32)[None],
        jnp.asarray(target_box, jnp.float32).reshape(1, 4),
        jnp.asarray(target_class, jnp.float32).reshape(-1)[:1],
        conf_thresh)


def od2score_ref(xyxy, conf, cls, target_box, target_class, conf_thresh):
    """Pure numpy reference reproducing the PyTorch forward."""
    xyxy = np.asarray(xyxy, np.float32)
    conf = np.asarray(conf, np.float32)
    cls = np.asarray(cls, np.float32)
    m = conf >= conf_thresh
    if not m.any():
        return np.float32(0.0)
    xyxy, conf, cls = xyxy[m], conf[m], cls[m]
    cm = cls == target_class
    if not cm.any():
        return np.float32(0.0)
    xyxy, conf = xyxy[cm], conf[cm]
    tb = np.asarray(target_box, np.float32)
    iw = np.clip(np.minimum(xyxy[:, 2], tb[2]) - np.maximum(xyxy[:, 0], tb[0]), 0, None)
    ih = np.clip(np.minimum(xyxy[:, 3], tb[3]) - np.maximum(xyxy[:, 1], tb[1]), 0, None)
    inter = iw * ih
    a1 = (xyxy[:, 2] - xyxy[:, 0]) * (xyxy[:, 3] - xyxy[:, 1])
    a2 = (tb[2] - tb[0]) * (tb[3] - tb[1])
    iou = inter / (a1 + a2 - inter + 1e-16)
    best = int(np.argmax(iou))
    return np.float32(conf[best] * iou[best])


if __name__ == "__main__":
    key = jax.random.PRNGKey(0)
    B, N = 5, 8
    k1, k2, k3, k4, k5, k6 = jax.random.split(key, 6)

    # Deterministic synthetic detections (stand-in for YOLO `results[0].boxes`).
    x1 = jax.random.uniform(k1, (B, N), minval=0.0, maxval=12.0)
    y1 = jax.random.uniform(k2, (B, N), minval=0.0, maxval=12.0)
    wh = jax.random.uniform(k3, (B, N, 2), minval=1.0, maxval=8.0)
    xyxy = jnp.stack([x1, y1, x1 + wh[..., 0], y1 + wh[..., 1]], axis=-1)   # (B, N, 4)
    conf = jax.random.uniform(k4, (B, N), minval=0.0, maxval=1.0)           # (B, N)
    cls = jax.random.randint(k5, (B, N), 0, 4).astype(jnp.float32)          # (B, N)

    # Guarantee one confident class-1 detection overlapping its target in image 0.
    xyxy = xyxy.at[0, 0].set(jnp.array([3.0, 3.0, 9.0, 9.0]))
    conf = conf.at[0, 0].set(0.9)
    cls = cls.at[0, 0].set(1.0)

    conf_thresh = 0.25
    tb_rand = jax.random.uniform(k6, (B, 2), minval=0.0, maxval=8.0)
    tboxes = jnp.concatenate([tb_rand, tb_rand + 6.0], axis=1)              # (B, 4)
    tboxes = tboxes.at[0].set(jnp.array([2.0, 2.0, 10.0, 10.0]))
    tclasses = jnp.array([1.0, 7.0, 2.0, 0.0, 3.0], jnp.float32)            # class 7 absent -> 0

    xyxy_np, conf_np, cls_np = map(np.asarray, (xyxy, conf, cls))
    tboxes_np, tclasses_np = np.asarray(tboxes), np.asarray(tclasses)

    # --- single (image, target) evaluation, matching the module's API --------
    s1 = jax.block_until_ready(
        od2score(xyxy[0], conf[0], cls[0], tboxes[0], 1, conf_thresh))
    r1 = od2score_ref(xyxy_np[0], conf_np[0], cls_np[0], tboxes_np[0], 1.0, conf_thresh)
    np.testing.assert_allclose(np.asarray(s1), np.array([r1]), rtol=1e-4, atol=1e-6)

    # --- B independent (image, target) pairs in one pallas_call --------------
    sb = jax.block_until_ready(
        od2score_batch(xyxy, conf, cls, tboxes, tclasses, conf_thresh))
    rb = np.array([od2score_ref(xyxy_np[i], conf_np[i], cls_np[i],
                                tboxes_np[i], float(tclasses_np[i]), conf_thresh)
                   for i in range(B)], np.float32)
    np.testing.assert_allclose(np.asarray(sb), rb, rtol=1e-4, atol=1e-6)

    # --- many targets vs ONE image's detections (slab DMA'd once) ------------
    mt_boxes = jnp.stack([tboxes[0], tboxes[1], tboxes[2],
                          jnp.array([0.0, 0.0, 6.0, 6.0]),
                          jnp.array([4.0, 4.0, 12.0, 12.0]),
                          jnp.array([1.0, 1.0, 5.0, 9.0])])                 # (6, 4)
    mt_classes = jnp.array([1.0, 1.0, 2.0, 3.0, 0.0, 7.0], jnp.float32)
    sm = jax.block_until_ready(
        od2score_multi_target(xyxy[0], conf[0], cls[0], mt_boxes, mt_classes, conf_thresh))
    mt_boxes_np, mt_classes_np = np.asarray(mt_boxes), np.asarray(mt_classes)
    rm = np.array([od2score_ref(xyxy_np[0], conf_np[0], cls_np[0],
                                mt_boxes_np[t], float(mt_classes_np[t]), conf_thresh)
                   for t in range(mt_boxes_np.shape[0])], np.float32)
    np.testing.assert_allclose(np.asarray(sm), rm, rtol=1e-4, atol=1e-6)

    print("KERNEL_OK")
</pallas_src>

<mosaic_0001>
module attributes {stable_mosaic.version = 11 : i64} {
  func.func @_od2score_kernel(%arg0: i32, %arg1: memref<6x8x8xf32, #tpu.memory_space<vmem>>, %arg2: memref<8x8xf32, #tpu.memory_space<vmem>>, %arg3: memref<1x8xf32, #tpu.memory_space<vmem>>) attributes {dimension_semantics = [#tpu.dimension_semantics<parallel>], iteration_bounds = array<i64: 1>, scalar_prefetch = 0 : i64, scratch_operands = 0 : i64, tpu.core_type = #tpu.core_type<tc>, window_params = [{transform_indices = @transform_0, window_bounds = array<i64: 6, 8, 8>}, {transform_indices = @transform_1, window_bounds = array<i64: 8, 8>}, {transform_indices = @transform_2, window_bounds = array<i64: 1, 8>}]} {
    %c0 = arith.constant 0 : index
    %c0_0 = arith.constant 0 : index
    %c0_1 = arith.constant 0 : index
    %0 = vector.load %arg1[%c0, %c0_0, %c0_1] : memref<6x8x8xf32, #tpu.memory_space<vmem>>, vector<1x8x8xf32>
    %1 = vector.shape_cast %0 : vector<1x8x8xf32> to vector<8x8xf32>
    %c1 = arith.constant 1 : index
    %c0_2 = arith.constant 0 : index
    %c0_3 = arith.constant 0 : index
    %2 = vector.load %arg1[%c1, %c0_2, %c0_3] : memref<6x8x8xf32, #tpu.memory_space<vmem>>, vector<1x8x8xf32>
    %3 = vector.shape_cast %2 : vector<1x8x8xf32> to vector<8x8xf32>
    %c2 = arith.constant 2 : index
    %c0_4 = arith.constant 0 : index
    %c0_5 = arith.constant 0 : index
    %4 = vector.load %arg1[%c2, %c0_4, %c0_5] : memref<6x8x8xf32, #tpu.memory_space<vmem>>, vector<1x8x8xf32>
    %5 = vector.shape_cast %4 : vector<1x8x8xf32> to vector<8x8xf32>
    %c3 = arith.constant 3 : index
    %c0_6 = arith.constant 0 : index
    %c0_7 = arith.constant 0 : index
    %6 = vector.load %arg1[%c3, %c0_6, %c0_7] : memref<6x8x8xf32, #tpu.memory_space<vmem>>, vector<1x8x8xf32>
    %7 = vector.shape_cast %6 : vector<1x8x8xf32> to vector<8x8xf32>
    %c4 = arith.constant 4 : index
    %c0_8 = arith.constant 0 : index
    %c0_9 = arith.constant 0 : index
    %8 = vector.load %arg1[%c4, %c0_8, %c0_9] : memref<6x8x8xf32, #tpu.memory_space<vmem>>, vector<1x8x8xf32>
    %9 = vector.shape_cast %8 : vector<1x8x8xf32> to vector<8x8xf32>
    %c5 = arith.constant 5 : index
    %c0_10 = arith.constant 0 : index
    %c0_11 = arith.constant 0 : index
    %10 = vector.load %arg1[%c5, %c0_10, %c0_11] : memref<6x8x8xf32, #tpu.memory_space<vmem>>, vector<1x8x8xf32>
    %11 = vector.shape_cast %10 : vector<1x8x8xf32> to vector<8x8xf32>
    %c0_12 = arith.constant 0 : index
    %c0_13 = arith.constant 0 : index
    %12 = vector.load %arg2[%c0_12, %c0_13] : memref<8x8xf32, #tpu.memory_space<vmem>>, vector<8x8xf32>
    %13 = vector.extract_strided_slice %12 {offsets = [0, 0], sizes = [1, 8], strides = [1, 1]} : vector<8x8xf32> to vector<1x8xf32>
    %14 = vector.extract_strided_slice %12 {offsets = [1, 0], sizes = [1, 8], strides = [1, 1]} : vector<8x8xf32> to vector<1x8xf32>
    %15 = vector.extract_strided_slice %12 {offsets = [2, 0], sizes = [1, 8], strides = [1, 1]} : vector<8x8xf32> to vector<1x8xf32>
    %16 = vector.extract_strided_slice %12 {offsets = [3, 0], sizes = [1, 8], strides = [1, 1]} : vector<8x8xf32> to vector<1x8xf32>
    %17 = vector.extract_strided_slice %12 {offsets = [4, 0], sizes = [1, 8], strides = [1, 1]} : vector<8x8xf32> to vector<1x8xf32>
    %18 = vector.extract_strided_slice %12 {offsets = [5, 0], sizes = [1, 8], strides = [1, 1]} : vector<8x8xf32> to vector<1x8xf32>
    %19 = vector.extract_strided_slice %12 {offsets = [6, 0], sizes = [1, 8], strides = [1, 1]} : vector<8x8xf32> to vector<1x8xf32>
    %20 = vector.broadcast %15 : vector<1x8xf32> to vector<8x8xf32>
    %21 = arith.minimumf %5, %20 : vector<8x8xf32>
    %22 = vector.broadcast %13 : vector<1x8xf32> to vector<8x8xf32>
    %23 = arith.maximumf %1, %22 : vector<8x8xf32>
    %24 = arith.subf %21, %23 : vector<8x8xf32>
    %cst = arith.constant 0.000000e+00 : f32
    %25 = vector.broadcast %cst : f32 to vector<8x8xf32>
    %26 = arith.maximumf %24, %25 : vector<8x8xf32>
    %27 = vector.broadcast %16 : vector<1x8xf32> to vector<8x8xf32>
    %28 = arith.minimumf %7, %27 : vector<8x8xf32>
    %29 = vector.broadcast %14 : vector<1x8xf32> to vector<8x8xf32>
    %30 = arith.maximumf %3, %29 : vector<8x8xf32>
    %31 = arith.subf %28, %30 : vector<8x8xf32>
    %cst_14 = arith.constant 0.000000e+00 : f32
    %32 = vector.broadcast %cst_14 : f32 to vector<8x8xf32>
    %33 = arith.maximumf %31, %32 : vector<8x8xf32>
    %34 = arith.mulf %26, %33 : vector<8x8xf32>
    %35 = arith.subf %5, %1 : vector<8x8xf32>
    %36 = arith.subf %7, %3 : vector<8x8xf32>
    %37 = arith.mulf %35, %36 : vector<8x8xf32>
    %38 = arith.subf %15, %13 : vector<1x8xf32>
    %39 = arith.subf %16, %14 : vector<1x8xf32>
    %40 = arith.mulf %38, %39 : vector<1x8xf32>
    %41 = vector.broadcast %40 : vector<1x8xf32> to vector<8x8xf32>
    %42 = arith.addf %37, %41 : vector<8x8xf32>
    %43 = arith.subf %42, %34 : vector<8x8xf32>
    %cst_15 = arith.constant 1.000000e-16 : f32
    %44 = vector.broadcast %cst_15 : f32 to vector<8x8xf32>
    %45 = arith.addf %43, %44 : vector<8x8xf32>
    %46 = arith.divf %34, %45 : vector<8x8xf32>
    %47 = tpu.iota {dimensions = array<i32: 0>} : vector<8x8xi32>
    %48 = arith.sitofp %47 : vector<8x8xi32> to vector<8x8xf32>
    %49 = vector.broadcast %18 : vector<1x8xf32> to vector<8x8xf32>
    %50 = arith.cmpf oge, %9, %49 : vector<8x8xf32>
    %51 = vector.broadcast %17 : vector<1x8xf32> to vector<8x8xf32>
    %52 = arith.cmpf oeq, %11, %51 : vector<8x8xf32>
    %53 = arith.andi %50, %52 : vector<8x8xi1>
    %54 = vector.broadcast %19 : vector<1x8xf32> to vector<8x8xf32>
    %55 = arith.cmpf olt, %48, %54 : vector<8x8xf32>
    %56 = arith.andi %53, %55 : vector<8x8xi1>
    %cst_16 = arith.constant -1.000000e+00 : f32
    %57 = vector.broadcast %cst_16 : f32 to vector<8x8xf32>
    %58 = arith.select %56, %46, %57 : vector<8x8xi1>, vector<8x8xf32>
    %cst_17 = arith.constant dense<0xFF800000> : vector<8xf32>
    %59 = vector.multi_reduction <maximumf>, %58, %cst_17 [0] : vector<8x8xf32> to vector<8xf32>
    %60 = vector.shape_cast %59 : vector<8xf32> to vector<1x8xf32>
    %61 = vector.broadcast %60 : vector<1x8xf32> to vector<8x8xf32>
    %62 = arith.cmpf oeq, %58, %61 : vector<8x8xf32>
    %cst_18 = arith.constant 8.000000e+00 : f32
    %63 = vector.broadcast %cst_18 : f32 to vector<8x8xf32>
    %64 = arith.select %62, %48, %63 : vector<8x8xi1>, vector<8x8xf32>
    %cst_19 = arith.constant dense<0x7F800000> : vector<8xf32>
    %65 = vector.multi_reduction <minimumf>, %64, %cst_19 [0] : vector<8x8xf32> to vector<8xf32>
    %66 = vector.shape_cast %65 : vector<8xf32> to vector<1x8xf32>
    %67 = vector.broadcast %66 : vector<1x8xf32> to vector<8x8xf32>
    %68 = arith.cmpf oeq, %48, %67 : vector<8x8xf32>
    %cst_20 = arith.constant 0xFF800000 : f32
    %69 = vector.broadcast %cst_20 : f32 to vector<8x8xf32>
    %70 = arith.select %68, %9, %69 : vector<8x8xi1>, vector<8x8xf32>
    %cst_21 = arith.constant dense<0xFF800000> : vector<8xf32>
    %71 = vector.multi_reduction <maximumf>, %70, %cst_21 [0] : vector<8x8xf32> to vector<8xf32>
    %72 = vector.shape_cast %71 : vector<8xf32> to vector<1x8xf32>
    %cst_22 = arith.constant 0.000000e+00 : f32
    %73 = vector.broadcast %cst_22 : f32 to vector<1x8xf32>
    %74 = arith.cmpf oge, %60, %73 : vector<1x8xf32>
    %75 = arith.mulf %72, %60 : vector<1x8xf32>
    %cst_23 = arith.constant 0.000000e+00 : f32
    %76 = vector.broadcast %cst_23 : f32 to vector<1x8xf32>
    %77 = arith.select %74, %75, %76 : vector<1x8xi1>, vector<1x8xf32>
    %c0_24 = arith.constant 0 : index
    %c0_25 = arith.constant 0 : index
    %78 = vector.load %arg3[%c0_24, %c0_25] : memref<1x8xf32, #tpu.memory_space<vmem>>, vector<1x8xf32>
    tpu.vector_store %arg3[%c0_24, %c0_25], %77 {strides = array<i32>} : memref<1x8xf32, #tpu.memory_space<vmem>>, vector<1x8xf32>,
    return
  }
  func.func @transform_0(%arg0: i32) -> (i32, i32, i32) {
    %c0_i32 = arith.constant 0 : i32
    %c0_i32_0 = arith.constant 0 : i32
    %c0_i32_1 = arith.constant 0 : i32
    return %c0_i32, %c0_i32_0, %arg0 : i32, i32, i32
  }
  func.func @transform_1(%arg0: i32) -> (i32, i32) {
    %c0_i32 = arith.constant 0 : i32
    %c0_i32_0 = arith.constant 0 : i32
    return %c0_i32, %arg0 : i32, i32
  }
  func.func @transform_2(%arg0: i32) -> (i32, i32) {
    %c0_i32 = arith.constant 0 : i32
    %c0_i32_0 = arith.constant 0 : i32
    return %c0_i32, %arg0 : i32, i32
  }
}

</mosaic_0001>

<llo_original>
// kernel: tpu_custom_call.1
$region0: #{tpu_custom_call.1}
  #allocation0 [shape = 'u32[]', space=smem, size = 0x4, offset = 0x4, fixed_abs, tag = 'smem constant byte address 0x4 - core index']
  #allocation1 [shape = 'u32[144,128]{1,0:T(1,128)}', space=vmem, size = 0x12000, scoped, tag = 'internal scratch']
  %s0 = inlined_call_operand.hbm [shape: f32[6,8,8], index: 0, kind: input, shape index: {}]
  %s1 = inlined_call_operand.hbm [shape: f32[8,8], index: 1, kind: input, shape index: {}]
  %s2 = inlined_call_operand.hbm [shape: f32[1,8], index: 2, kind: output, shape index: {}]
  %s3 = sld [smem:[#allocation0]]
  $region26: #{tpu_custom_call.1} parent=0
    _
  %s5 = ssub.s32 1, %s3
  %s6 = scalar_select 0, %s5, %s3
  $region1: #{tpu_custom_call.1} parent=0
    #allocation2 [shape = 'u8[24576]{0}', space=vmem, size = 0x6000, scoped, tag = 'input window, operand 0, single buffered']
    #allocation3 [shape = 's32[1]{0}', space=sflag, size = 0x4, scoped, tag = 'scoped memory for tpu_custom_call.1']
    #allocation4 [shape = 's32[1]{0}', space=sflag, size = 0x4, scoped, tag = 'scoped memory for tpu_custom_call.1']
    #allocation5 [shape = 'u8[4096]{0}', space=vmem, size = 0x1000, scoped, tag = 'input window, operand 1, single buffered']
    #allocation6 [shape = 's32[1]{0}', space=sflag, size = 0x4, scoped, tag = 'scoped memory for tpu_custom_call.1']
    #allocation7 [shape = 'u8[512]{0}', space=vmem, size = 0x400, scoped, tag = 'output window, operand 0, single buffered']
    %7 = vsyncpa [#allocation3], 0
    %8 = vsyncpa [#allocation6], 0
    %9 = vsyncpa [#allocation4], 0
    // Predicated region
    $region2: #{tpu_custom_call.1} parent=1 // pred_check
      _
    $region3: #{tpu_custom_call.1} parent=1 // pred_check_branch
      %11 = sbr.rel (0) target = $region5
    $region4: #{tpu_custom_call.1} parent=1 // pred_region
      %s13 = ssub.s32 768, 768
      %14 = vsyncadd [#allocation3], %s13
      %s15 = sshll.u32 [#allocation2], 4
      %s16 = int_to_ptr.vmem [resolvable:$true] %s15
      %21 = dma.hbm_to_vmem [thread:$0]  %s0, 768, %s16, [#allocation3], 128, 128, 8
    $region5: #{tpu_custom_call.1} parent=1 // pred_fallthru
      _
    // Predicated region
    $region6: #{tpu_custom_call.1} parent=1 // pred_check
      _
    $region7: #{tpu_custom_call.1} parent=1 // pred_check_branch
      %23 = sbr.rel (0) target = $region9
    $region8: #{tpu_custom_call.1} parent=1 // pred_region
      %s25 = ssub.s32 128, 128
      %26 = vsyncadd [#allocation6], %s25
      %s28 = sshll.u32 [#allocation5], 4
      %s29 = int_to_ptr.vmem [resolvable:$true] %s28
      %31 = dma.hbm_to_vmem [thread:$0]  %s1, 128, %s29, [#allocation6]
    $region9: #{tpu_custom_call.1} parent=1 // pred_fallthru
      _
    // Predicated region
    $region10: #{tpu_custom_call.1} parent=1 // pred_check
      _
    $region11: #{tpu_custom_call.1} parent=1 // pred_check_branch
      %33 = sbr.rel (0) target = $region13
    $region12: #{tpu_custom_call.1} parent=1 // pred_region
      %34 = dma.done [#allocation3], 768
    $region13: #{tpu_custom_call.1} parent=1 // pred_fallthru
      _
    // Predicated region
    $region14: #{tpu_custom_call.1} parent=1 // pred_check
      _
    $region15: #{tpu_custom_call.1} parent=1 // pred_check_branch
      %36 = sbr.rel (0) target = $region17
    $region16: #{tpu_custom_call.1} parent=1 // pred_region
      %37 = dma.done [#allocation6], 128
    $region17: #{tpu_custom_call.1} parent=1 // pred_fallthru
      _
    %v38 = vld [vmem:[#allocation2] sm:$0xff]
    %s39 = scalar_lea.vmem [#allocation2], 8
    %v40 = vld [vmem:[%s39] sm:$0xff]
    %s41 = scalar_lea.vmem [#allocation2], 16
    %v42 = vld [vmem:[%s41] sm:$0xff]
    %s43 = scalar_lea.vmem [#allocation2], 24
    %v44 = vld [vmem:[%s43] sm:$0xff]
    %s45 = scalar_lea.vmem [#allocation2], 32
    %v46 = vld [vmem:[%s45] sm:$0xff]
    %s47 = scalar_lea.vmem [#allocation2], 40
    %v48 = vld [vmem:[%s47] sm:$0xff]
    %v49 = vld [vmem:[#allocation5] sm:$0xff]
    %v50 = vlaneseq
    %v51 = vshrl.u32 %v50, 7
    %v52 = vsub.s32 2, %v51
    %v53 = vrot.slane %v49, %v52
    %v54 = vmin.f32 %v42, %v53
    %v55 = vlaneseq
    %v56 = vshrl.u32 %v55, 7
    %v57 = vsub.s32 0, %v56
    %v58 = vrot.slane %v49, %v57
    %v59 = vmax.f32 %v38, %v58
    %v60 = vsub.f32 %v54, %v59
    %v61 = vmax.f32 %v60, 0.0
    %v62 = vlaneseq
    %v63 = vshrl.u32 %v62, 7
    %v64 = vsub.s32 3, %v63
    %v65 = vrot.slane %v49, %v64
    %v66 = vmin.f32 %v44, %v65
    %v67 = vlaneseq
    %v68 = vshrl.u32 %v67, 7
    %v69 = vsub.s32 1, %v68
    %v70 = vrot.slane %v49, %v69
    %v71 = vmax.f32 %v40, %v70
    %v72 = vsub.f32 %v66, %v71
    %v73 = vmax.f32 %v72, 0.0
    %v74 = vmul.f32 %v61, %v73
    %v75 = vsub.f32 %v42, %v38
    %v76 = vsub.f32 %v44, %v40
    %v77 = vmul.f32 %v75, %v76
    %v79 = vrot.slane %v49, 6
    %v81 = vsub.f32 %v49, %v79
    %v83 = vrot.slane %v81, 1
    %v85 = vmul.f32 %v81, %v83
    %v86 = vlaneseq
    %v87 = vshrl.u32 %v86, 7
    %v88 = vsub.s32 2, %v87
    %v89 = vrot.slane %v85, %v88
    %v90 = vadd.f32 %v77, %v89
    %v91 = vsub.f32 %v90, %v74
    %v92 = vadd.f32 %v91, 1e-16
    %v93 = vrcp.pop %v92
    %v94 = vmul.f32 %v74, %v93
    %v95 = vlaneseq
    %v96 = vshrl.u32 %v95, 7
    %v97 = vcvt.s32.f32 %v96
    %v98 = vlaneseq
    %v99 = vshrl.u32 %v98, 7
    %v100 = vsub.s32 5, %v99
    %v101 = vrot.slane %v49, %v100
    %vm102 = vcmp.ge.f32.partialorder %v46, %v101
    %v103 = vlaneseq
    %v104 = vshrl.u32 %v103, 7
    %v105 = vsub.s32 4, %v104
    %v106 = vrot.slane %v49, %v105
    %vm107 = vcmp.eq.f32.partialorder %v48, %v106
    %vm108 = vmand %vm102, %vm107
    %v109 = vlaneseq
    %v110 = vshrl.u32 %v109, 7
    %v111 = vsub.s32 6, %v110
    %v112 = vrot.slane %v49, %v111
    %vm113 = vcmp.lt.f32.partialorder %v97, %v112
    %vm114 = vmand %vm108, %vm113
    %v115 = vsel %vm114, %v94, -1.0
    %vm116 = vcmask 64512
    %v117 = vsel %vm116, %v115, -inf
    %v118 = vrot.slane %v117, 4
    %v119 = vmax.f32 %v117, %v118
    %v120 = vrot.slane %v119, 2
    %v121 = vmax.f32 %v119, %v120
    %v122 = vrot.slane %v121, 1
    %v123 = vmax.f32 %v121, %v122
    %vm124 = vcmp.eq.f32.partialorder %v115, %v123
    %v125 = vsel %vm124, %v97, 8.0
    %v126 = vsel %vm116, %v125, inf
    %v127 = vrot.slane %v126, 4
    %v128 = vmin.f32 %v126, %v127
    %v129 = vrot.slane %v128, 2
    %v130 = vmin.f32 %v128, %v129
    %v131 = vrot.slane %v130, 1
    %v132 = vmin.f32 %v130, %v131
    %vm133 = vcmp.eq.f32.partialorder %v97, %v132
    %v134 = vsel %vm133, %v46, -inf
    %v135 = vsel %vm116, %v134, -inf
    %v136 = vrot.slane %v135, 4
    %v137 = vmax.f32 %v135, %v136
    %v138 = vrot.slane %v137, 2
    %v139 = vmax.f32 %v137, %v138
    %v140 = vrot.slane %v139, 1
    %v141 = vmax.f32 %v139, %v140
    %vm142 = vcmp.ge.f32.partialorder %v123, 0.0
    %v143 = vmul.f32 %v141, %v123
    %v144 = vsel %vm142, %v143, 0.0
    %vm145 = vcmask 57344
    %146 = vst.msk [vmem:[#allocation7] sm:$0x1] %vm145, %v144
    // Predicated region
    $region18: #{tpu_custom_call.1} parent=1 // pred_check
      _
    $region19: #{tpu_custom_call.1} parent=1 // pred_check_branch
      %148 = sbr.rel (0) target = $region21
    $region20: #{tpu_custom_call.1} parent=1 // pred_region
      %s150 = ssub.s32 16, 16
      %151 = vsyncadd [#allocation4], %s150
      %s153 = sshll.u32 [#allocation7], 4
      %s154 = int_to_ptr.vmem [resolvable:$true] %s153
      %156 = dma.vmem_to_hbm [thread:$0]  %s154, 16, %s2, [#allocation4]
    $region21: #{tpu_custom_call.1} parent=1 // pred_fallthru
      _
    // Predicated region
    $region22: #{tpu_custom_call.1} parent=1 // pred_check
      _
    $region23: #{tpu_custom_call.1} parent=1 // pred_check_branch
      %158 = sbr.rel (0) target = $region25
    $region24: #{tpu_custom_call.1} parent=1 // pred_region
      %159 = dma.done [#allocation4], 16
    $region25: #{tpu_custom_call.1} parent=1 // pred_fallthru
      _
    %160 = vsyncpa [#allocation3], 1
    %161 = vsyncpa [#allocation6], 1
    %162 = vsyncpa [#allocation4], 1

</llo_original>
